<compile_context>
chip_gen: v7x
topology: tpu7x:2x2x1
jax: 0.10.0
libtpu: 0.0.40
codegen_flags: <defaults>
</compile_context>

<pallas_src>
import functools

import jax
import jax.numpy as jnp
from jax.experimental import pallas as pl
from jax.experimental.pallas import tpu as pltpu

_MIB = 1024 * 1024


def _round_up(x: int, m: int) -> int:
    return (x + m - 1) // m * m


def _cdiv(a: int, b: int) -> int:
    return (a + b - 1) // b


@functools.lru_cache(maxsize=None)
def _tpu_tuning():
    """Generation-aware (vmem_limit_bytes, grid_sharing_cores, block_b_cap).

    v7x:     64 MiB VMEM/TC, 2 TCs share a "parallel" grid axis -> request
             ~52 MiB, cap the batch tile at 192 rows (bounds f32 intermediates)
             and make sure both cores get >= 2 grid steps.
    v5e/v6e: 128 MiB VMEM, 1 TC -> request ~112 MiB, allow 512-row tiles.
    """
    try:
        vmem_cap = int(pltpu.get_tpu_info().vmem_capacity_bytes)
    except Exception:
        return 64 * _MIB, 1, 256          # conservative fallback
    if vmem_cap <= 64 * _MIB:             # v7x-class TensorCore
        return min(vmem_cap - 12 * _MIB, 52 * _MIB), 2, 192
    return min(vmem_cap - 16 * _MIB, 112 * _MIB), 1, 512


def _resident_spec(shape, single_buffer):
    """Constant-index (VMEM-resident) BlockSpec for weights/biases.

    A constant index_map means the block is never re-fetched across grid
    steps, so a single buffer (pl.Buffered(1)) halves its VMEM footprint vs
    the default double-buffering with zero perf cost.
    """
    index_map = lambda i: (0,) * len(shape)
    if single_buffer:
        try:
            return pl.BlockSpec(shape, index_map, pipeline_mode=pl.Buffered(1))
        except Exception:   # pipeline_mode / Buffered(1) unsupported here
            pass
    return pl.BlockSpec(shape, index_map)


def _fc_layer_kernel(x_ref, w1_ref, b1_ref, w2_ref, b2_ref, w3_ref, b3_ref,
                     o_ref):
    """Fused 3-layer MLP: relu(relu(x@W1+b1)@W2+b2)@W3+b3.

    Matmul operands are bf16 (MXU native); accumulation, bias adds and the
    output are f32.  Dropout = identity (eval mode).
    """
    x = x_ref[...]                                        # (block_b, d_in_p) bf16

    # Layer 1: Linear + ReLU
    h = jnp.dot(x, w1_ref[...], preferred_element_type=jnp.float32)
    h = jnp.maximum(h + b1_ref[...], 0.0)                 # f32

    # Layer 2: Linear + ReLU
    h = jnp.dot(h.astype(jnp.bfloat16), w2_ref[...],
                preferred_element_type=jnp.float32)
    h = jnp.maximum(h + b2_ref[...], 0.0)

    # Layer 3: Linear (logits)
    out = jnp.dot(h.astype(jnp.bfloat16), w3_ref[...],
                  preferred_element_type=jnp.float32)
    o_ref[...] = (out + b3_ref[...]).astype(o_ref.dtype)


@functools.partial(jax.jit, static_argnames=("block_b", "single_buffer_weights"))
def fc_layer_forward(x, w1, b1, w2, b2, w3, b3, *, block_b=None,
                     single_buffer_weights=True):
    """Runs the fused FC_layer forward pass with Pallas.

    x  : (B, d_in)     float32
    w1 : (d_in, h1)    b1 : (1, h1)     (weights already transposed vs PyTorch)
    w2 : (h1, h2)      b2 : (1, h2)
    w3 : (h2, d_out)   b3 : (1, d_out)
    returns (B, d_out) in x.dtype
    """
    B, d_in = x.shape
    h1 = w1.shape[1]
    h2 = w2.shape[1]
    d_out = w3.shape[1]
    out_dtype = x.dtype

    vmem_limit, n_cores, block_cap = _tpu_tuning()

    # Lane-dense padding: every feature dim -> multiple of 128.
    d_in_p = _round_up(d_in, 128)
    h1_p = _round_up(h1, 128)
    h2_p = _round_up(h2, 128)
    d_out_p = _round_up(d_out, 128)

    # Batch tile: as large as the generation allows (amortizes ~0.35us/step,
    # fills MXU rows), but clamped tightly for small batches to a multiple of
    # 16 rows (bf16 (16,128) sublane tile -> no sublane padding, no 8x waste).
    bb = block_cap if block_b is None else block_b
    bb = max(16, min(bb, block_cap, _round_up(B, 16)))
    bb = _round_up(bb, 16)
    if n_cores > 1:
        # Megacore: give each TensorCore >= 2 grid steps when B permits.
        min_steps = 2 * n_cores
        if B >= min_steps * 16:
            bb = min(bb, _round_up(_cdiv(B, min_steps), 16))
    B_p = _round_up(B, bb)
    grid = (B_p // bb,)

    bf16 = jnp.bfloat16
    f32 = jnp.float32

    def pad2(a, rows, cols, dt):
        return jnp.pad(a.astype(dt),
                       ((0, rows - a.shape[0]), (0, cols - a.shape[1])))

    x_p = pad2(x, B_p, d_in_p, bf16)
    w1_p = pad2(w1, d_in_p, h1_p, bf16)
    w2_p = pad2(w2, h1_p, h2_p, bf16)
    w3_p = pad2(w3, h2_p, d_out_p, bf16)
    b1_p = pad2(b1, 1, h1_p, f32)
    b2_p = pad2(b2, 1, h2_p, f32)
    b3_p = pad2(b3, 1, d_out_p, f32)

    # Advisory cost estimate for XLA's scheduler.
    flops = 2 * B_p * (d_in_p * h1_p + h1_p * h2_p + h2_p * d_out_p)
    bytes_accessed = (
        2 * (x_p.size + w1_p.size + w2_p.size + w3_p.size)      # bf16 inputs
        + 4 * (b1_p.size + b2_p.size + b3_p.size)               # f32 biases
        + 4 * B_p * d_out_p)                                    # f32 output
    cost = pl.CostEstimate(flops=flops, transcendentals=0,
                           bytes_accessed=bytes_accessed)

    # Batch tiled along the grid; weights/biases use constant index maps so
    # they stay resident in VMEM across grid steps (single-buffered).
    in_specs = [
        pl.BlockSpec((bb, d_in_p), lambda i: (i, 0)),                 # x tile
        _resident_spec((d_in_p, h1_p), single_buffer_weights),        # W1
        _resident_spec((1, h1_p), single_buffer_weights),             # b1
        _resident_spec((h1_p, h2_p), single_buffer_weights),          # W2
        _resident_spec((1, h2_p), single_buffer_weights),             # b2
        _resident_spec((h2_p, d_out_p), single_buffer_weights),       # W3
        _resident_spec((1, d_out_p), single_buffer_weights),          # b3
    ]
    out_specs = pl.BlockSpec((bb, d_out_p), lambda i: (i, 0))

    out_p = pl.pallas_call(
        _fc_layer_kernel,
        out_shape=jax.ShapeDtypeStruct((B_p, d_out_p), out_dtype),
        grid_spec=pltpu.PrefetchScalarGridSpec(
            num_scalar_prefetch=0,
            grid=grid,
            in_specs=in_specs,
            out_specs=out_specs,
        ),
        compiler_params=pltpu.CompilerParams(
            dimension_semantics=("parallel",),
            vmem_limit_bytes=vmem_limit,
        ),
        cost_estimate=cost,
    )(x_p, w1_p, b1_p, w2_p, b2_p, w3_p, b3_p)

    return out_p[:B, :d_out]


def init_linear_params(key, fan_in, fan_out):
    """Mimics PyTorch nn.Linear default init: U(-1/sqrt(fan_in), +1/sqrt(fan_in)).
    Weight is returned already transposed: (fan_in, fan_out)."""
    kw, kb = jax.random.split(key)
    bound = 1.0 / jnp.sqrt(jnp.float32(fan_in))
    w = jax.random.uniform(kw, (fan_in, fan_out), jnp.float32, -bound, bound)
    b = jax.random.uniform(kb, (1, fan_out), jnp.float32, -bound, bound)
    return w, b


def fc_layer_reference(x, w1, b1, w2, b2, w3, b3):
    """Plain-JAX reference with matched (bf16 operand / f32 accumulate) precision."""
    bf = jnp.bfloat16
    h = jnp.maximum(
        jnp.dot(x.astype(bf), w1.astype(bf),
                preferred_element_type=jnp.float32) + b1, 0.0)
    h = jnp.maximum(
        jnp.dot(h.astype(bf), w2.astype(bf),
                preferred_element_type=jnp.float32) + b2, 0.0)
    return jnp.dot(h.astype(bf), w3.astype(bf),
                   preferred_element_type=jnp.float32) + b3


if __name__ == "__main__":
    # Small shapes consistent with FC_layer(d_in, d_out, h1, h2); feature dims
    # deliberately not 128-aligned to exercise the padding path.
    B, d_in, h1, h2, d_out = 16, 48, 256, 128, 10

    root = jax.random.PRNGKey(0)
    kx, k1, k2, k3 = jax.random.split(root, 4)

    x = jax.random.normal(kx, (B, d_in), jnp.float32)
    w1, b1 = init_linear_params(k1, d_in, h1)
    w2, b2 = init_linear_params(k2, h1, h2)
    w3, b3 = init_linear_params(k3, h2, d_out)

    try:
        out = jax.block_until_ready(
            fc_layer_forward(x, w1, b1, w2, b2, w3, b3,
                             single_buffer_weights=True))
    except Exception:
        # Fallback for jax builds that reject single-buffered (Buffered(1)) specs.
        out = jax.block_until_ready(
            fc_layer_forward(x, w1, b1, w2, b2, w3, b3,
                             single_buffer_weights=False))

    ref = fc_layer_reference(x, w1, b1, w2, b2, w3, b3)
    assert out.shape == (B, d_out)
    assert jnp.allclose(out, ref, atol=1e-2, rtol=1e-2), "mismatch vs reference"

    print("KERNEL_OK")
</pallas_src>

<mosaic_0001>
module attributes {stable_mosaic.version = 11 : i64} {
  func.func @_fc_layer_kernel(%arg0: i32, %arg1: memref<16x128xbf16, #tpu.memory_space<vmem>>, %arg2: memref<128x256xbf16, #tpu.memory_space<vmem>>, %arg3: memref<1x256xf32, #tpu.memory_space<vmem>>, %arg4: memref<256x128xbf16, #tpu.memory_space<vmem>>, %arg5: memref<1x128xf32, #tpu.memory_space<vmem>>, %arg6: memref<128x128xbf16, #tpu.memory_space<vmem>>, %arg7: memref<1x128xf32, #tpu.memory_space<vmem>>, %arg8: memref<16x128xf32, #tpu.memory_space<vmem>>) attributes {dimension_semantics = [#tpu.dimension_semantics<parallel>], iteration_bounds = array<i64: 1>, scalar_prefetch = 0 : i64, scratch_operands = 0 : i64, tpu.core_type = #tpu.core_type<tc>, window_params = [{transform_indices = @transform_0, window_bounds = array<i64: 16, 128>}, {pipeline_mode = #tpu.pipeline_mode<synchronous>, transform_indices = @transform_1, window_bounds = array<i64: 128, 256>}, {pipeline_mode = #tpu.pipeline_mode<synchronous>, transform_indices = @transform_2, window_bounds = array<i64: 1, 256>}, {pipeline_mode = #tpu.pipeline_mode<synchronous>, transform_indices = @transform_3, window_bounds = array<i64: 256, 128>}, {pipeline_mode = #tpu.pipeline_mode<synchronous>, transform_indices = @transform_4, window_bounds = array<i64: 1, 128>}, {pipeline_mode = #tpu.pipeline_mode<synchronous>, transform_indices = @transform_5, window_bounds = array<i64: 128, 128>}, {pipeline_mode = #tpu.pipeline_mode<synchronous>, transform_indices = @transform_6, window_bounds = array<i64: 1, 128>}, {transform_indices = @transform_7, window_bounds = array<i64: 16, 128>}]} {
    %c0 = arith.constant 0 : index
    %c0_0 = arith.constant 0 : index
    %0 = vector.load %arg1[%c0, %c0_0] : memref<16x128xbf16, #tpu.memory_space<vmem>>, vector<16x128xbf16>
    %c0_1 = arith.constant 0 : index
    %c0_2 = arith.constant 0 : index
    %1 = vector.load %arg2[%c0_1, %c0_2] : memref<128x256xbf16, #tpu.memory_space<vmem>>, vector<128x256xbf16>
    %cst = arith.constant dense<0.000000e+00> : vector<16x256xf32>
    %2 = tpu.matmul %0, %1, %cst {dimension_numbers = #tpu.dot_dimension_numbers<[1], [0], [0], [1], [0, 0, 1, 1], [], []>} : vector<16x128xbf16>, vector<128x256xbf16>, vector<16x256xf32> -> vector<16x256xf32>
    %c0_3 = arith.constant 0 : index
    %c0_4 = arith.constant 0 : index
    %3 = vector.load %arg3[%c0_3, %c0_4] : memref<1x256xf32, #tpu.memory_space<vmem>>, vector<1x256xf32>
    %4 = vector.broadcast %3 : vector<1x256xf32> to vector<16x256xf32>
    %5 = arith.addf %2, %4 : vector<16x256xf32>
    %cst_5 = arith.constant 0.000000e+00 : f32
    %6 = vector.broadcast %cst_5 : f32 to vector<16x256xf32>
    %7 = arith.maximumf %5, %6 : vector<16x256xf32>
    %8 = arith.truncf %7 : vector<16x256xf32> to vector<16x256xbf16>
    %c0_6 = arith.constant 0 : index
    %c0_7 = arith.constant 0 : index
    %9 = vector.load %arg4[%c0_6, %c0_7] : memref<256x128xbf16, #tpu.memory_space<vmem>>, vector<256x128xbf16>
    %cst_8 = arith.constant dense<0.000000e+00> : vector<16x128xf32>
    %10 = tpu.matmul %8, %9, %cst_8 {dimension_numbers = #tpu.dot_dimension_numbers<[1], [0], [0], [1], [0, 0, 1, 1], [], []>} : vector<16x256xbf16>, vector<256x128xbf16>, vector<16x128xf32> -> vector<16x128xf32>
    %c0_9 = arith.constant 0 : index
    %c0_10 = arith.constant 0 : index
    %11 = vector.load %arg5[%c0_9, %c0_10] : memref<1x128xf32, #tpu.memory_space<vmem>>, vector<1x128xf32>
    %12 = vector.broadcast %11 : vector<1x128xf32> to vector<16x128xf32>
    %13 = arith.addf %10, %12 : vector<16x128xf32>
    %cst_11 = arith.constant 0.000000e+00 : f32
    %14 = vector.broadcast %cst_11 : f32 to vector<16x128xf32>
    %15 = arith.maximumf %13, %14 : vector<16x128xf32>
    %16 = arith.truncf %15 : vector<16x128xf32> to vector<16x128xbf16>
    %c0_12 = arith.constant 0 : index
    %c0_13 = arith.constant 0 : index
    %17 = vector.load %arg6[%c0_12, %c0_13] : memref<128x128xbf16, #tpu.memory_space<vmem>>, vector<128x128xbf16>
    %cst_14 = arith.constant dense<0.000000e+00> : vector<16x128xf32>
    %18 = tpu.matmul %16, %17, %cst_14 {dimension_numbers = #tpu.dot_dimension_numbers<[1], [0], [0], [1], [0, 0, 1, 1], [], []>} : vector<16x128xbf16>, vector<128x128xbf16>, vector<16x128xf32> -> vector<16x128xf32>
    %c0_15 = arith.constant 0 : index
    %c0_16 = arith.constant 0 : index
    %19 = vector.load %arg7[%c0_15, %c0_16] : memref<1x128xf32, #tpu.memory_space<vmem>>, vector<1x128xf32>
    %20 = vector.broadcast %19 : vector<1x128xf32> to vector<16x128xf32>
    %21 = arith.addf %18, %20 : vector<16x128xf32>
    %c0_17 = arith.constant 0 : index
    %c0_18 = arith.constant 0 : index
    %22 = vector.load %arg8[%c0_17, %c0_18] : memref<16x128xf32, #tpu.memory_space<vmem>>, vector<16x128xf32>
    tpu.vector_store %arg8[%c0_17, %c0_18], %21 {strides = array<i32>} : memref<16x128xf32, #tpu.memory_space<vmem>>, vector<16x128xf32>,
    return
  }
  func.func @transform_0(%arg0: i32) -> (i32, i32) {
    %c0_i32 = arith.constant 0 : i32
    %c0_i32_0 = arith.constant 0 : i32
    return %arg0, %c0_i32 : i32, i32
  }
  func.func @transform_1(%arg0: i32) -> (i32, i32) {
    %c0_i32 = arith.constant 0 : i32
    %c0_i32_0 = arith.constant 0 : i32
    %c0_i32_1 = arith.constant 0 : i32
    return %c0_i32, %c0_i32_0 : i32, i32
  }
  func.func @transform_2(%arg0: i32) -> (i32, i32) {
    %c0_i32 = arith.constant 0 : i32
    %c0_i32_0 = arith.constant 0 : i32
    %c0_i32_1 = arith.constant 0 : i32
    return %c0_i32, %c0_i32_0 : i32, i32
  }
  func.func @transform_3(%arg0: i32) -> (i32, i32) {
    %c0_i32 = arith.constant 0 : i32
    %c0_i32_0 = arith.constant 0 : i32
    %c0_i32_1 = arith.constant 0 : i32
    return %c0_i32, %c0_i32_0 : i32, i32
  }
  func.func @transform_4(%arg0: i32) -> (i32, i32) {
    %c0_i32 = arith.constant 0 : i32
    %c0_i32_0 = arith.constant 0 : i32
    %c0_i32_1 = arith.constant 0 : i32
    return %c0_i32, %c0_i32_0 : i32, i32
  }
  func.func @transform_5(%arg0: i32) -> (i32, i32) {
    %c0_i32 = arith.constant 0 : i32
    %c0_i32_0 = arith.constant 0 : i32
    %c0_i32_1 = arith.constant 0 : i32
    return %c0_i32, %c0_i32_0 : i32, i32
  }
  func.func @transform_6(%arg0: i32) -> (i32, i32) {
    %c0_i32 = arith.constant 0 : i32
    %c0_i32_0 = arith.constant 0 : i32
    %c0_i32_1 = arith.constant 0 : i32
    return %c0_i32, %c0_i32_0 : i32, i32
  }
  func.func @transform_7(%arg0: i32) -> (i32, i32) {
    %c0_i32 = arith.constant 0 : i32
    %c0_i32_0 = arith.constant 0 : i32
    return %arg0, %c0_i32 : i32, i32
  }
}

module attributes {stable_mosaic.version = 11 : i64} {
  func.func @_fc_layer_kernel(%arg0: i32, %arg1: memref<16x128xbf16, #tpu.memory_space<vmem>>, %arg2: memref<128x256xbf16, #tpu.memory_space<vmem>>, %arg3: memref<1x256xf32, #tpu.memory_space<vmem>>, %arg4: memref<256x128xbf16, #tpu.memory_space<vmem>>, %arg5: memref<1x128xf32, #tpu.memory_space<vmem>>, %arg6: memref<128x128xbf16, #tpu.memory_space<vmem>>, %arg7: memref<1x128xf32, #tpu.memory_space<vmem>>, %arg8: memref<16x128xf32, #tpu.memory_space<vmem>>) attributes {dimension_semantics = [#tpu.dimension_semantics<parallel>], iteration_bounds = array<i64: 1>, scalar_prefetch = 0 : i64, scratch_operands = 0 : i64, tpu.core_type = #tpu.core_type<tc>, window_params = [{transform_indices = @transform_0, window_bounds = array<i64: 16, 128>}, {pipeline_mode = #tpu.pipeline_mode<synchronous>, transform_indices = @transform_1, window_bounds = array<i64: 128, 256>}, {pipeline_mode = #tpu.pipeline_mode<synchronous>, transform_indices = @transform_2, window_bounds = array<i64: 1, 256>}, {pipeline_mode = #tpu.pipeline_mode<synchronous>, transform_indices = @transform_3, window_bounds = array<i64: 256, 128>}, {pipeline_mode = #tpu.pipeline_mode<synchronous>, transform_indices = @transform_4, window_bounds = array<i64: 1, 128>}, {pipeline_mode = #tpu.pipeline_mode<synchronous>, transform_indices = @transform_5, window_bounds = array<i64: 128, 128>}, {pipeline_mode = #tpu.pipeline_mode<synchronous>, transform_indices = @transform_6, window_bounds = array<i64: 1, 128>}, {transform_indices = @transform_7, window_bounds = array<i64: 16, 128>}]} {
    %c0 = arith.constant 0 : index
    %c0_0 = arith.constant 0 : index
    %0 = vector.load %arg1[%c0, %c0_0] : memref<16x128xbf16, #tpu.memory_space<vmem>>, vector<16x128xbf16>
    %c0_1 = arith.constant 0 : index
    %c0_2 = arith.constant 0 : index
    %1 = vector.load %arg2[%c0_1, %c0_2] : memref<128x256xbf16, #tpu.memory_space<vmem>>, vector<128x256xbf16>
    %cst = arith.constant dense<0.000000e+00> : vector<16x256xf32>
    %2 = tpu.matmul %0, %1, %cst {dimension_numbers = #tpu.dot_dimension_numbers<[1], [0], [0], [1], [0, 0, 1, 1], [], []>} : vector<16x128xbf16>, vector<128x256xbf16>, vector<16x256xf32> -> vector<16x256xf32>
    %c0_3 = arith.constant 0 : index
    %c0_4 = arith.constant 0 : index
    %3 = vector.load %arg3[%c0_3, %c0_4] : memref<1x256xf32, #tpu.memory_space<vmem>>, vector<1x256xf32>
    %4 = vector.broadcast %3 : vector<1x256xf32> to vector<16x256xf32>
    %5 = arith.addf %2, %4 : vector<16x256xf32>
    %cst_5 = arith.constant 0.000000e+00 : f32
    %6 = vector.broadcast %cst_5 : f32 to vector<16x256xf32>
    %7 = arith.maximumf %5, %6 : vector<16x256xf32>
    %8 = arith.truncf %7 : vector<16x256xf32> to vector<16x256xbf16>
    %c0_6 = arith.constant 0 : index
    %c0_7 = arith.constant 0 : index
    %9 = vector.load %arg4[%c0_6, %c0_7] : memref<256x128xbf16, #tpu.memory_space<vmem>>, vector<256x128xbf16>
    %cst_8 = arith.constant dense<0.000000e+00> : vector<16x128xf32>
    %10 = tpu.matmul %8, %9, %cst_8 {dimension_numbers = #tpu.dot_dimension_numbers<[1], [0], [0], [1], [0, 0, 1, 1], [], []>} : vector<16x256xbf16>, vector<256x128xbf16>, vector<16x128xf32> -> vector<16x128xf32>
    %c0_9 = arith.constant 0 : index
    %c0_10 = arith.constant 0 : index
    %11 = vector.load %arg5[%c0_9, %c0_10] : memref<1x128xf32, #tpu.memory_space<vmem>>, vector<1x128xf32>
    %12 = vector.broadcast %11 : vector<1x128xf32> to vector<16x128xf32>
    %13 = arith.addf %10, %12 : vector<16x128xf32>
    %cst_11 = arith.constant 0.000000e+00 : f32
    %14 = vector.broadcast %cst_11 : f32 to vector<16x128xf32>
    %15 = arith.maximumf %13, %14 : vector<16x128xf32>
    %16 = arith.truncf %15 : vector<16x128xf32> to vector<16x128xbf16>
    %c0_12 = arith.constant 0 : index
    %c0_13 = arith.constant 0 : index
    %17 = vector.load %arg6[%c0_12, %c0_13] : memref<128x128xbf16, #tpu.memory_space<vmem>>, vector<128x128xbf16>
    %cst_14 = arith.constant dense<0.000000e+00> : vector<16x128xf32>
    %18 = tpu.matmul %16, %17, %cst_14 {dimension_numbers = #tpu.dot_dimension_numbers<[1], [0], [0], [1], [0, 0, 1, 1], [], []>} : vector<16x128xbf16>, vector<128x128xbf16>, vector<16x128xf32> -> vector<16x128xf32>
    %c0_15 = arith.constant 0 : index
    %c0_16 = arith.constant 0 : index
    %19 = vector.load %arg7[%c0_15, %c0_16] : memref<1x128xf32, #tpu.memory_space<vmem>>, vector<1x128xf32>
    %20 = vector.broadcast %19 : vector<1x128xf32> to vector<16x128xf32>
    %21 = arith.addf %18, %20 : vector<16x128xf32>
    %c0_17 = arith.constant 0 : index
    %c0_18 = arith.constant 0 : index
    %22 = vector.load %arg8[%c0_17, %c0_18] : memref<16x128xf32, #tpu.memory_space<vmem>>, vector<16x128xf32>
    tpu.vector_store %arg8[%c0_17, %c0_18], %21 {strides = array<i32>} : memref<16x128xf32, #tpu.memory_space<vmem>>, vector<16x128xf32>,
    return
  }
  func.func @transform_0(%arg0: i32) -> (i32, i32) {
    %c0_i32 = arith.constant 0 : i32
    %c0_i32_0 = arith.constant 0 : i32
    return %arg0, %c0_i32 : i32, i32
  }
  func.func @transform_1(%arg0: i32) -> (i32, i32) {
    %c0_i32 = arith.constant 0 : i32
    %c0_i32_0 = arith.constant 0 : i32
    %c0_i32_1 = arith.constant 0 : i32
    return %c0_i32, %c0_i32_0 : i32, i32
  }
  func.func @transform_2(%arg0: i32) -> (i32, i32) {
    %c0_i32 = arith.constant 0 : i32
    %c0_i32_0 = arith.constant 0 : i32
    %c0_i32_1 = arith.constant 0 : i32
    return %c0_i32, %c0_i32_0 : i32, i32
  }
  func.func @transform_3(%arg0: i32) -> (i32, i32) {
    %c0_i32 = arith.constant 0 : i32
    %c0_i32_0 = arith.constant 0 : i32
    %c0_i32_1 = arith.constant 0 : i32
    return %c0_i32, %c0_i32_0 : i32, i32
  }
  func.func @transform_4(%arg0: i32) -> (i32, i32) {
    %c0_i32 = arith.constant 0 : i32
    %c0_i32_0 = arith.constant 0 : i32
    %c0_i32_1 = arith.constant 0 : i32
    return %c0_i32, %c0_i32_0 : i32, i32
  }
  func.func @transform_5(%arg0: i32) -> (i32, i32) {
    %c0_i32 = arith.constant 0 : i32
    %c0_i32_0 = arith.constant 0 : i32
    %c0_i32_1 = arith.constant 0 : i32
    return %c0_i32, %c0_i32_0 : i32, i32
  }
  func.func @transform_6(%arg0: i32) -> (i32, i32) {
    %c0_i32 = arith.constant 0 : i32
    %c0_i32_0 = arith.constant 0 : i32
    %c0_i32_1 = arith.constant 0 : i32
    return %c0_i32, %c0_i32_0 : i32, i32
  }
  func.func @transform_7(%arg0: i32) -> (i32, i32) {
    %c0_i32 = arith.constant 0 : i32
    %c0_i32_0 = arith.constant 0 : i32
    return %arg0, %c0_i32 : i32, i32
  }
}

</mosaic_0001>

<llo_original>
// kernel: fc_layer_forward.1
$region0: #{fc_layer_forward.1}
  #allocation0 [shape = 'u32[]', space=smem, size = 0x4, offset = 0x4, fixed_abs, tag = 'smem constant byte address 0x4 - core index']
  #allocation1 [shape = 'u32[144,128]{1,0:T(1,128)}', space=vmem, size = 0x12000, scoped, tag = 'internal scratch']
  %s0 = inlined_call_operand.hbm [shape: bf16[16,128], index: 0, kind: input, shape index: {}]
  %s1 = inlined_call_operand.hbm [shape: bf16[128,256], index: 1, kind: input, shape index: {}]
  %s2 = inlined_call_operand.hbm [shape: f32[1,256], index: 2, kind: input, shape index: {}]
  %s3 = inlined_call_operand.hbm [shape: bf16[256,128], index: 3, kind: input, shape index: {}]
  %s4 = inlined_call_operand.hbm [shape: f32[1,128], index: 4, kind: input, shape index: {}]
  %s5 = inlined_call_operand.hbm [shape: bf16[128,128], index: 5, kind: input, shape index: {}]
  %s6 = inlined_call_operand.hbm [shape: f32[1,128], index: 6, kind: input, shape index: {}]
  %s7 = inlined_call_operand.hbm [shape: f32[16,128], index: 7, kind: output, shape index: {}]
  %s8 = sld [smem:[#allocation0]]
  $region66: #{fc_layer_forward.1} parent=0
    _
  %s10 = ssub.s32 1, %s8
  %s11 = scalar_select 0, %s10, %s8
  $region1: #{fc_layer_forward.1} parent=0
    #allocation2 [shape = 'u8[4096]{0}', space=vmem, size = 0x1000, scoped, tag = 'input window, operand 0, single buffered']
    #allocation3 [shape = 's32[1]{0}', space=sflag, size = 0x4, scoped, tag = 'scoped memory for fc_layer_forward.1']
    #allocation4 [shape = 's32[1]{0}', space=sflag, size = 0x4, scoped, tag = 'scoped memory for fc_layer_forward.1']
    #allocation5 [shape = 'u8[65536]{0}', space=vmem, size = 0x10000, scoped, tag = 'input window, operand 1, single buffered']
    #allocation6 [shape = 's32[1]{0}', space=sflag, size = 0x4, scoped, tag = 'scoped memory for fc_layer_forward.1']
    #allocation7 [shape = 'u8[1024]{0}', space=vmem, size = 0x400, scoped, tag = 'input window, operand 2, single buffered']
    #allocation8 [shape = 'u8[65536]{0}', space=vmem, size = 0x10000, scoped, tag = 'input window, operand 3, single buffered']
    #allocation9 [shape = 's32[1]{0}', space=sflag, size = 0x4, scoped, tag = 'scoped memory for fc_layer_forward.1']
    #allocation10 [shape = 'u8[512]{0}', space=vmem, size = 0x400, scoped, tag = 'input window, operand 4, single buffered']
    #allocation11 [shape = 'u8[32768]{0}', space=vmem, size = 0x8000, scoped, tag = 'input window, operand 5, single buffered']
    #allocation12 [shape = 's32[1]{0}', space=sflag, size = 0x4, scoped, tag = 'scoped memory for fc_layer_forward.1']
    #allocation13 [shape = 'u8[512]{0}', space=vmem, size = 0x400, scoped, tag = 'input window, operand 6, single buffered']
    #allocation14 [shape = 'u8[8192]{0}', space=vmem, size = 0x2000, scoped, tag = 'output window, operand 0, single buffered']
    %12 = vsyncpa [#allocation3], 0
    %13 = vsyncpa [#allocation6], 0
    %14 = vsyncpa [#allocation9], 0
    %15 = vsyncpa [#allocation12], 0
    %16 = vsyncpa [#allocation4], 0
    // Predicated region
    $region2: #{fc_layer_forward.1} parent=1 // pred_check
      _
    $region3: #{fc_layer_forward.1} parent=1 // pred_check_branch
      %18 = sbr.rel (0) target = $region5
    $region4: #{fc_layer_forward.1} parent=1 // pred_region
      %s20 = ssub.s32 128, 128
      %21 = vsyncadd [#allocation3], %s20
      %s22 = sshll.u32 [#allocation2], 4
      %s23 = int_to_ptr.vmem [resolvable:$true] %s22
      %28 = dma.hbm_to_vmem [thread:$0]  %s0, 128, %s23, [#allocation3], 64, 64, 4
    $region5: #{fc_layer_forward.1} parent=1 // pred_fallthru
      _
    // Predicated region
    $region6: #{fc_layer_forward.1} parent=1 // pred_check
      _
    $region7: #{fc_layer_forward.1} parent=1 // pred_check_branch
      %30 = sbr.rel (0) target = $region9
    $region8: #{fc_layer_forward.1} parent=1 // pred_region
      %s32 = ssub.s32 2048, 2048
      %33 = vsyncadd [#allocation6], %s32
      %s34 = sshll.u32 [#allocation5], 4
      %s35 = int_to_ptr.vmem [resolvable:$true] %s34
      %40 = dma.hbm_to_vmem [thread:$0]  %s1, 2048, %s35, [#allocation6], 128, 128, 8
    $region9: #{fc_layer_forward.1} parent=1 // pred_fallthru
      _
    // Predicated region
    $region10: #{fc_layer_forward.1} parent=1 // pred_check
      _
    $region11: #{fc_layer_forward.1} parent=1 // pred_check_branch
      %42 = sbr.rel (0) target = $region13
    $region12: #{fc_layer_forward.1} parent=1 // pred_region
      %s44 = ssub.s32 32, 32
      %45 = vsyncadd [#allocation6], %s44
      %s47 = sshll.u32 [#allocation7], 4
      %s48 = int_to_ptr.vmem [resolvable:$true] %s47
      %50 = dma.hbm_to_vmem [thread:$0]  %s2, 32, %s48, [#allocation6]
    $region13: #{fc_layer_forward.1} parent=1 // pred_fallthru
      _
    // Predicated region
    $region14: #{fc_layer_forward.1} parent=1 // pred_check
      _
    $region15: #{fc_layer_forward.1} parent=1 // pred_check_branch
      %52 = sbr.rel (0) target = $region17
    $region16: #{fc_layer_forward.1} parent=1 // pred_region
      %s54 = ssub.s32 2048, 2048
      %55 = vsyncadd [#allocation9], %s54
      %s56 = sshll.u32 [#allocation8], 4
      %s57 = int_to_ptr.vmem [resolvable:$true] %s56
      %62 = dma.hbm_to_vmem [thread:$0]  %s3, 2048, %s57, [#allocation9], 64, 64, 4
    $region17: #{fc_layer_forward.1} parent=1 // pred_fallthru
      _
    // Predicated region
    $region18: #{fc_layer_forward.1} parent=1 // pred_check
      _
    $region19: #{fc_layer_forward.1} parent=1 // pred_check_branch
      %64 = sbr.rel (0) target = $region21
    $region20: #{fc_layer_forward.1} parent=1 // pred_region
      %s66 = ssub.s32 16, 16
      %67 = vsyncadd [#allocation9], %s66
      %s69 = sshll.u32 [#allocation10], 4
      %s70 = int_to_ptr.vmem [resolvable:$true] %s69
      %72 = dma.hbm_to_vmem [thread:$0]  %s4, 16, %s70, [#allocation9]
    $region21: #{fc_layer_forward.1} parent=1 // pred_fallthru
      _
    // Predicated region
    $region22: #{fc_layer_forward.1} parent=1 // pred_check
      _
    $region23: #{fc_layer_forward.1} parent=1 // pred_check_branch
      %74 = sbr.rel (0) target = $region25
    $region24: #{fc_layer_forward.1} parent=1 // pred_region
      %s76 = ssub.s32 1024, 1024
      %77 = vsyncadd [#allocation12], %s76
      %s78 = sshll.u32 [#allocation11], 4
      %s79 = int_to_ptr.vmem [resolvable:$true] %s78
      %84 = dma.hbm_to_vmem [thread:$0]  %s5, 1024, %s79, [#allocation12], 64, 64, 4
    $region25: #{fc_layer_forward.1} parent=1 // pred_fallthru
      _
    // Predicated region
    $region26: #{fc_layer_forward.1} parent=1 // pred_check
      _
    $region27: #{fc_layer_forward.1} parent=1 // pred_check_branch
      %86 = sbr.rel (0) target = $region29
    $region28: #{fc_layer_forward.1} parent=1 // pred_region
      %s88 = ssub.s32 16, 16
      %89 = vsyncadd [#allocation12], %s88
      %s91 = sshll.u32 [#allocation13], 4
      %s92 = int_to_ptr.vmem [resolvable:$true] %s91
      %94 = dma.hbm_to_vmem [thread:$0]  %s6, 16, %s92, [#allocation12]
    $region29: #{fc_layer_forward.1} parent=1 // pred_fallthru
      _
    // Predicated region
    $region30: #{fc_layer_forward.1} parent=1 // pred_check
      _
    $region31: #{fc_layer_forward.1} parent=1 // pred_check_branch
      %96 = sbr.rel (0) target = $region33
    $region32: #{fc_layer_forward.1} parent=1 // pred_region
      %97 = dma.done [#allocation3], 128
    $region33: #{fc_layer_forward.1} parent=1 // pred_fallthru
      _
    // Predicated region
    $region34: #{fc_layer_forward.1} parent=1 // pred_check
      _
    $region35: #{fc_layer_forward.1} parent=1 // pred_check_branch
      %99 = sbr.rel (0) target = $region37
    $region36: #{fc_layer_forward.1} parent=1 // pred_region
      %100 = dma.done [#allocation6], 2048
    $region37: #{fc_layer_forward.1} parent=1 // pred_fallthru
      _
    // Predicated region
    $region38: #{fc_layer_forward.1} parent=1 // pred_check
      _
    $region39: #{fc_layer_forward.1} parent=1 // pred_check_branch
      %102 = sbr.rel (0) target = $region41
    $region40: #{fc_layer_forward.1} parent=1 // pred_region
      %103 = dma.done [#allocation6], 32
    $region41: #{fc_layer_forward.1} parent=1 // pred_fallthru
      _
    // Predicated region
    $region42: #{fc_layer_forward.1} parent=1 // pred_check
      _
    $region43: #{fc_layer_forward.1} parent=1 // pred_check_branch
      %105 = sbr.rel (0) target = $region45
    $region44: #{fc_layer_forward.1} parent=1 // pred_region
      %106 = dma.done [#allocation9], 2048
    $region45: #{fc_layer_forward.1} parent=1 // pred_fallthru
      _
    // Predicated region
    $region46: #{fc_layer_forward.1} parent=1 // pred_check
      _
    $region47: #{fc_layer_forward.1} parent=1 // pred_check_branch
      %108 = sbr.rel (0) target = $region49
    $region48: #{fc_layer_forward.1} parent=1 // pred_region
      %109 = dma.done [#allocation9], 16
    $region49: #{fc_layer_forward.1} parent=1 // pred_fallthru
      _
    // Predicated region
    $region50: #{fc_layer_forward.1} parent=1 // pred_check
      _
    $region51: #{fc_layer_forward.1} parent=1 // pred_check_branch
      %111 = sbr.rel (0) target = $region53
    $region52: #{fc_layer_forward.1} parent=1 // pred_region
      %112 = dma.done [#allocation12], 1024
    $region53: #{fc_layer_forward.1} parent=1 // pred_fallthru
      _
    // Predicated region
    $region54: #{fc_layer_forward.1} parent=1 // pred_check
      _
    $region55: #{fc_layer_forward.1} parent=1 // pred_check_branch
      %114 = sbr.rel (0) target = $region57
    $region56: #{fc_layer_forward.1} parent=1 // pred_region
      %115 = dma.done [#allocation12], 16
    $region57: #{fc_layer_forward.1} parent=1 // pred_fallthru
      _
    %v117 = vld [vmem:[#allocation2] sm:$0xf]
    %v118 = vld [vmem:[#allocation2 + $0x4] sm:$0xf]
    %v119 = vld [vmem:[#allocation5] sm:$0xff]
    %v120 = vld [vmem:[#allocation5 + $0x8] sm:$0xff]
    %v121 = vld [vmem:[#allocation5 + $0x10] sm:$0xff]
    %v122 = vld [vmem:[#allocation5 + $0x18] sm:$0xff]
    %v123 = vld [vmem:[#allocation5 + $0x20] sm:$0xff]
    %v124 = vld [vmem:[#allocation5 + $0x28] sm:$0xff]
    %v125 = vld [vmem:[#allocation5 + $0x30] sm:$0xff]
    %v126 = vld [vmem:[#allocation5 + $0x38] sm:$0xff]
    %v127 = vld [vmem:[#allocation5 + $0x40] sm:$0xff]
    %v128 = vld [vmem:[#allocation5 + $0x48] sm:$0xff]
    %v129 = vld [vmem:[#allocation5 + $0x50] sm:$0xff]
    %v130 = vld [vmem:[#allocation5 + $0x58] sm:$0xff]
    %v131 = vld [vmem:[#allocation5 + $0x60] sm:$0xff]
    %v132 = vld [vmem:[#allocation5 + $0x68] sm:$0xff]
    %v133 = vld [vmem:[#allocation5 + $0x70] sm:$0xff]
    %v134 = vld [vmem:[#allocation5 + $0x78] sm:$0xff]
    %v135 = vld [vmem:[#allocation7] sm:$0x3]
    %v137 = vlaneseq
    %v138 = vshrl.u32 %v137, 7
    %v139 = vsub.s32 0, %v138
    %v140 = vrot.slane %v135, %v139
    %v141 = vlaneseq
    %v142 = vshrl.u32 %v141, 7
    %v143 = vsub.s32 1, %v142
    %v144 = vrot.slane %v135, %v143
    %v149 = vunpack.c.l.b16 %v117
    %v150 = vunpack.c.l.b16 %v118
    %v151 = vpack.c.b16 %v150, %v149
    %v169 = vunpack.c.l.b16 %v119
    %v170 = vunpack.c.h.b16 %v119
    %v171 = vunpack.c.l.b16 %v120
    %v172 = vunpack.c.h.b16 %v120
    %v173 = vunpack.c.l.b16 %v121
    %v174 = vunpack.c.h.b16 %v121
    %v175 = vunpack.c.l.b16 %v122
    %v176 = vunpack.c.h.b16 %v122
    %v177 = vunpack.c.l.b16 %v123
    %v178 = vunpack.c.h.b16 %v123
    %v179 = vunpack.c.l.b16 %v124
    %v180 = vunpack.c.h.b16 %v124
    %v181 = vunpack.c.l.b16 %v125
    %v182 = vunpack.c.h.b16 %v125
    %v183 = vunpack.c.l.b16 %v126
    %v184 = vunpack.c.h.b16 %v126
    %v185 = vunpack.c.l.b16 %v127
    %v186 = vunpack.c.h.b16 %v127
    %v187 = vunpack.c.l.b16 %v128
    %v188 = vunpack.c.h.b16 %v128
    %v189 = vunpack.c.l.b16 %v129
    %v190 = vunpack.c.h.b16 %v129
    %v191 = vunpack.c.l.b16 %v130
    %v192 = vunpack.c.h.b16 %v130
    %v193 = vunpack.c.l.b16 %v131
    %v194 = vunpack.c.h.b16 %v131
    %v195 = vunpack.c.l.b16 %v132
    %v196 = vunpack.c.h.b16 %v132
    %v197 = vunpack.c.l.b16 %v133
    %v198 = vunpack.c.h.b16 %v133
    %v199 = vunpack.c.l.b16 %v134
    %v200 = vunpack.c.h.b16 %v134
    %v201 = vpack.c.b16 %v171, %v169
    %v202 = vpack.c.b16 %v172, %v170
    %v203 = vpack.c.b16 %v175, %v173
    %v204 = vpack.c.b16 %v176, %v174
    %v205 = vpack.c.b16 %v179, %v177
    %v206 = vpack.c.b16 %v180, %v178
    %v207 = vpack.c.b16 %v183, %v181
    %v208 = vpack.c.b16 %v184, %v182
    %v209 = vpack.c.b16 %v187, %v185
    %v210 = vpack.c.b16 %v188, %v186
    %v211 = vpack.c.b16 %v191, %v189
    %v212 = vpack.c.b16 %v192, %v190
    %v213 = vpack.c.b16 %v195, %v193
    %v214 = vpack.c.b16 %v196, %v194
    %v215 = vpack.c.b16 %v199, %v197
    %v216 = vpack.c.b16 %v200, %v198
    %233 = vmatprep.subr.bf16.mxu0 %v202
    %234 = vmatpush1.bf16.msra.mxu0 %v201
    %235 = vmatprep.subr.bf16.mxu0 %v204
    %236 = vmatpush1.bf16.msra.mxu0 %v203
    %237 = vmatprep.subr.bf16.mxu0 %v206
    %238 = vmatpush1.bf16.msra.mxu0 %v205
    %239 = vmatprep.subr.bf16.mxu0 %v208
    %240 = vmatpush1.bf16.msra.mxu0 %v207
    %241 = vmatprep.subr.bf16.mxu0 %v210
    %242 = vmatpush1.bf16.msra.mxu0 %v209
    %243 = vmatprep.subr.bf16.mxu0 %v212
    %244 = vmatpush1.bf16.msra.mxu0 %v211
    %245 = vmatprep.subr.bf16.mxu0 %v214
    %246 = vmatpush1.bf16.msra.mxu0 %v213
    %247 = vmatprep.subr.bf16.mxu0 %v216
    %248 = vmatpush1.bf16.msra.mxu0 %v215
    %249 = vmatprep.subr.bf16.mxu0 0
    %250 = vmatpush1.bf16.msra.mxu0 0
    %251 = vmatprep.subr.bf16.mxu0 0
    %252 = vmatpush1.bf16.msra.mxu0 0
    %253 = vmatprep.subr.bf16.mxu0 0
    %254 = vmatpush1.bf16.msra.mxu0 0
    %255 = vmatprep.subr.bf16.mxu0 0
    %256 = vmatpush1.bf16.msra.mxu0 0
    %257 = vmatprep.subr.bf16.mxu0 0
    %258 = vmatpush1.bf16.msra.mxu0 0
    %259 = vmatprep.subr.bf16.mxu0 0
    %260 = vmatpush1.bf16.msra.mxu0 0
    %261 = vmatprep.subr.bf16.mxu0 0
    %262 = vmatpush1.bf16.msra.mxu0 0
    %263 = vmatprep.subr.bf16.mxu0 0
    %264 = vmatpush1.bf16.msra.mxu0 0
    %265 = vmatprep.mubr.bf16.mxu0 0
    %266 = vmatmul.mubr.bf16.gmra.mrb[0].mxu0 %v151
    %v267 = vpop.f32.mrb[0].mxu0
    %v268 = vadd.f32 %v140, %v267
    %v269 = vpop.f32.mrb[0].mxu0
    %v270 = vadd.f32 %v144, %v269
    %v271 = vpop.f32.mrb[0].mxu0
    %v272 = vadd.f32 %v140, %v271
    %v273 = vpop.f32.mrb[0].mxu0
    %v274 = vadd.f32 %v144, %v273
    %275 = vdwg.mxu0
    %v276 = vmax.f32 %v268, 0.0
    %v277 = vmax.f32 %v270, 0.0
    %v278 = vmax.f32 %v272, 0.0
    %v279 = vmax.f32 %v274, 0.0
    %v280 = vpack.c.bf16 %v278, %v276
    %v281 = vpack.c.bf16 %v279, %v277
    %v282 = vld [vmem:[#allocation8] sm:$0xf]
    %v283 = vld [vmem:[#allocation8 + $0x4] sm:$0xf]
    %v284 = vld [vmem:[#allocation8 + $0x8] sm:$0xf]
    %v285 = vld [vmem:[#allocation8 + $0xc] sm:$0xf]
    %v286 = vld [vmem:[#allocation8 + $0x10] sm:$0xf]
    %v287 = vld [vmem:[#allocation8 + $0x14] sm:$0xf]
    %v288 = vld [vmem:[#allocation8 + $0x18] sm:$0xf]
    %v289 = vld [vmem:[#allocation8 + $0x1c] sm:$0xf]
    %v290 = vld [vmem:[#allocation8 + $0x20] sm:$0xf]
    %v291 = vld [vmem:[#allocation8 + $0x24] sm:$0xf]
    %v292 = vld [vmem:[#allocation8 + $0x28] sm:$0xf]
    %v293 = vld [vmem:[#allocation8 + $0x2c] sm:$0xf]
    %v294 = vld [vmem:[#allocation8 + $0x30] sm:$0xf]
    %v295 = vld [vmem:[#allocation8 + $0x34] sm:$0xf]
    %v296 = vld [vmem:[#allocation8 + $0x38] sm:$0xf]
    %v297 = vld [vmem:[#allocation8 + $0x3c] sm:$0xf]
    %v298 = vld [vmem:[#allocation8 + $0x40] sm:$0xf]
    %v299 = vld [vmem:[#allocation8 + $0x44] sm:$0xf]
    %v300 = vld [vmem:[#allocation8 + $0x48] sm:$0xf]
    %v301 = vld [vmem:[#allocation8 + $0x4c] sm:$0xf]
    %v302 = vld [vmem:[#allocation8 + $0x50] sm:$0xf]
    %v303 = vld [vmem:[#allocation8 + $0x54] sm:$0xf]
    %v304 = vld [vmem:[#allocation8 + $0x58] sm:$0xf]
    %v305 = vld [vmem:[#allocation8 + $0x5c] sm:$0xf]
    %v306 = vld [vmem:[#allocation8 + $0x60] sm:$0xf]
    %v307 = vld [vmem:[#allocation8 + $0x64] sm:$0xf]
    %v308 = vld [vmem:[#allocation8 + $0x68] sm:$0xf]
    %v309 = vld [vmem:[#allocation8 + $0x6c] sm:$0xf]
    %v310 = vld [vmem:[#allocation8 + $0x70] sm:$0xf]
    %v311 = vld [vmem:[#allocation8 + $0x74] sm:$0xf]
    %v312 = vld [vmem:[#allocation8 + $0x78] sm:$0xf]
    %v313 = vld [vmem:[#allocation8 + $0x7c] sm:$0xf]
    %v314 = vld [vmem:[#allocation10] sm:$0x1]
    %v316 = vlaneseq
    %v317 = vshrl.u32 %v316, 7
    %v318 = vsub.s32 0, %v317
    %v319 = vrot.slane %v314, %v318
    %v353 = vunpack.c.l.b16 %v282
    %v354 = vunpack.c.l.b16 %v283
    %v355 = vunpack.c.l.b16 %v284
    %v356 = vunpack.c.l.b16 %v285
    %v357 = vunpack.c.l.b16 %v286
    %v358 = vunpack.c.l.b16 %v287
    %v359 = vunpack.c.l.b16 %v288
    %v360 = vunpack.c.l.b16 %v289
    %v361 = vunpack.c.l.b16 %v290
    %v362 = vunpack.c.l.b16 %v291
    %v363 = vunpack.c.l.b16 %v292
    %v364 = vunpack.c.l.b16 %v293
    %v365 = vunpack.c.l.b16 %v294
    %v366 = vunpack.c.l.b16 %v295
    %v367 = vunpack.c.l.b16 %v296
    %v368 = vunpack.c.l.b16 %v297
    %v369 = vunpack.c.l.b16 %v298
    %v370 = vunpack.c.l.b16 %v299
    %v371 = vunpack.c.l.b16 %v300
    %v372 = vunpack.c.l.b16 %v301
    %v373 = vunpack.c.l.b16 %v302
    %v374 = vunpack.c.l.b16 %v303
    %v375 = vunpack.c.l.b16 %v304
    %v376 = vunpack.c.l.b16 %v305
    %v377 = vunpack.c.l.b16 %v306
    %v378 = vunpack.c.l.b16 %v307
    %v379 = vunpack.c.l.b16 %v308
    %v380 = vunpack.c.l.b16 %v309
    %v381 = vunpack.c.l.b16 %v310
    %v382 = vunpack.c.l.b16 %v311
    %v383 = vunpack.c.l.b16 %v312
    %v384 = vunpack.c.l.b16 %v313
    %v385 = vpack.c.b16 %v354, %v353
    %v386 = vpack.c.b16 %v356, %v355
    %v387 = vpack.c.b16 %v358, %v357
    %v388 = vpack.c.b16 %v360, %v359
    %v389 = vpack.c.b16 %v362, %v361
    %v390 = vpack.c.b16 %v364, %v363
    %v391 = vpack.c.b16 %v366, %v365
    %v392 = vpack.c.b16 %v368, %v367
    %v393 = vpack.c.b16 %v370, %v369
    %v394 = vpack.c.b16 %v372, %v371
    %v395 = vpack.c.b16 %v374, %v373
    %v396 = vpack.c.b16 %v376, %v375
    %v397 = vpack.c.b16 %v378, %v377
    %v398 = vpack.c.b16 %v380, %v379
    %v399 = vpack.c.b16 %v382, %v381
    %v400 = vpack.c.b16 %v384, %v383
    %417 = vmatprep.subr.bf16.mxu0 0
    %418 = vmatpush1.bf16.msra.mxu0 %v385
    %419 = vmatprep.subr.bf16.mxu0 0
    %420 = vmatpush1.bf16.msra.mxu0 %v386
    %421 = vmatprep.subr.bf16.mxu0 0
    %422 = vmatpush1.bf16.msra.mxu0 %v387
    %423 = vmatprep.subr.bf16.mxu0 0
    %424 = vmatpush1.bf16.msra.mxu0 %v388
    %425 = vmatprep.subr.bf16.mxu0 0
    %426 = vmatpush1.bf16.msra.mxu0 %v389
    %427 = vmatprep.subr.bf16.mxu0 0
    %428 = vmatpush1.bf16.msra.mxu0 %v390
    %429 = vmatprep.subr.bf16.mxu0 0
    %430 = vmatpush1.bf16.msra.mxu0 %v391
    %431 = vmatprep.subr.bf16.mxu0 0
    %432 = vmatpush1.bf16.msra.mxu0 %v392
    %433 = vmatprep.subr.bf16.mxu0 0
    %434 = vmatpush1.bf16.msra.mxu0 %v393
    %435 = vmatprep.subr.bf16.mxu0 0
    %436 = vmatpush1.bf16.msra.mxu0 %v394
    %437 = vmatprep.subr.bf16.mxu0 0
    %438 = vmatpush1.bf16.msra.mxu0 %v395
    %439 = vmatprep.subr.bf16.mxu0 0
    %440 = vmatpush1.bf16.msra.mxu0 %v396
    %441 = vmatprep.subr.bf16.mxu0 0
    %442 = vmatpush1.bf16.msra.mxu0 %v397
    %443 = vmatprep.subr.bf16.mxu0 0
    %444 = vmatpush1.bf16.msra.mxu0 %v398
    %445 = vmatprep.subr.bf16.mxu0 0
    %446 = vmatpush1.bf16.msra.mxu0 %v399
    %447 = vmatprep.subr.bf16.mxu0 0
    %448 = vmatpush1.bf16.msra.mxu0 %v400
    %449 = vmatprep.mubr.bf16.mxu0 %v281
    %450 = vmatmul.mubr.bf16.gmra.mrb[0].mxu0 %v280
    %v451 = vpop.f32.mrb[0].mxu0
    %v452 = vadd.f32 %v319, %v451
    %v453 = vpop.f32.mrb[0].mxu0
    %v454 = vpop.f32.mrb[0].mxu0
    %v455 = vadd.f32 %v319, %v454
    %v456 = vpop.f32.mrb[0].mxu0
    %457 = vdwg.mxu0
    %v458 = vmax.f32 %v452, 0.0
    %v459 = vmax.f32 %v455, 0.0
    %v460 = vpack.c.bf16 %v459, %v458
    %v461 = vld [vmem:[#allocation11] sm:$0xf]
    %v462 = vld [vmem:[#allocation11 + $0x4] sm:$0xf]
    %v463 = vld [vmem:[#allocation11 + $0x8] sm:$0xf]
    %v464 = vld [vmem:[#allocation11 + $0xc] sm:$0xf]
    %v465 = vld [vmem:[#allocation11 + $0x10] sm:$0xf]
    %v466 = vld [vmem:[#allocation11 + $0x14] sm:$0xf]
    %v467 = vld [vmem:[#allocation11 + $0x18] sm:$0xf]
    %v468 = vld [vmem:[#allocation11 + $0x1c] sm:$0xf]
    %v469 = vld [vmem:[#allocation11 + $0x20] sm:$0xf]
    %v470 = vld [vmem:[#allocation11 + $0x24] sm:$0xf]
    %v471 = vld [vmem:[#allocation11 + $0x28] sm:$0xf]
    %v472 = vld [vmem:[#allocation11 + $0x2c] sm:$0xf]
    %v473 = vld [vmem:[#allocation11 + $0x30] sm:$0xf]
    %v474 = vld [vmem:[#allocation11 + $0x34] sm:$0xf]
    %v475 = vld [vmem:[#allocation11 + $0x38] sm:$0xf]
    %v476 = vld [vmem:[#allocation11 + $0x3c] sm:$0xf]
    %v477 = vld [vmem:[#allocation13] sm:$0x1]
    %v479 = vlaneseq
    %v480 = vshrl.u32 %v479, 7
    %v481 = vsub.s32 0, %v480
    %v482 = vrot.slane %v477, %v481
    %v500 = vunpack.c.l.b16 %v461
    %v501 = vunpack.c.l.b16 %v462
    %v502 = vunpack.c.l.b16 %v463
    %v503 = vunpack.c.l.b16 %v464
    %v504 = vunpack.c.l.b16 %v465
    %v505 = vunpack.c.l.b16 %v466
    %v506 = vunpack.c.l.b16 %v467
    %v507 = vunpack.c.l.b16 %v468
    %v508 = vunpack.c.l.b16 %v469
    %v509 = vunpack.c.l.b16 %v470
    %v510 = vunpack.c.l.b16 %v471
    %v511 = vunpack.c.l.b16 %v472
    %v512 = vunpack.c.l.b16 %v473
    %v513 = vunpack.c.l.b16 %v474
    %v514 = vunpack.c.l.b16 %v475
    %v515 = vunpack.c.l.b16 %v476
    %v516 = vpack.c.b16 %v501, %v500
    %v517 = vpack.c.b16 %v503, %v502
    %v518 = vpack.c.b16 %v505, %v504
    %v519 = vpack.c.b16 %v507, %v506
    %v520 = vpack.c.b16 %v509, %v508
    %v521 = vpack.c.b16 %v511, %v510
    %v522 = vpack.c.b16 %v513, %v512
    %v523 = vpack.c.b16 %v515, %v514
    %532 = vmatprep.subr.bf16.mxu0 0
    %533 = vmatpush1.bf16.msra.mxu0 %v516
    %534 = vmatprep.subr.bf16.mxu0 0
    %535 = vmatpush1.bf16.msra.mxu0 %v517
    %536 = vmatprep.subr.bf16.mxu0 0
    %537 = vmatpush1.bf16.msra.mxu0 %v518
    %538 = vmatprep.subr.bf16.mxu0 0
    %539 = vmatpush1.bf16.msra.mxu0 %v519
    %540 = vmatprep.subr.bf16.mxu0 0
    %541 = vmatpush1.bf16.msra.mxu0 %v520
    %542 = vmatprep.subr.bf16.mxu0 0
    %543 = vmatpush1.bf16.msra.mxu0 %v521
    %544 = vmatprep.subr.bf16.mxu0 0
    %545 = vmatpush1.bf16.msra.mxu0 %v522
    %546 = vmatprep.subr.bf16.mxu0 0
    %547 = vmatpush1.bf16.msra.mxu0 %v523
    %548 = vmatprep.subr.bf16.mxu0 0
    %549 = vmatpush1.bf16.msra.mxu0 0
    %550 = vmatprep.subr.bf16.mxu0 0
    %551 = vmatpush1.bf16.msra.mxu0 0
    %552 = vmatprep.subr.bf16.mxu0 0
    %553 = vmatpush1.bf16.msra.mxu0 0
    %554 = vmatprep.subr.bf16.mxu0 0
    %555 = vmatpush1.bf16.msra.mxu0 0
    %556 = vmatprep.subr.bf16.mxu0 0
    %557 = vmatpush1.bf16.msra.mxu0 0
    %558 = vmatprep.subr.bf16.mxu0 0
    %559 = vmatpush1.bf16.msra.mxu0 0
    %560 = vmatprep.subr.bf16.mxu0 0
    %561 = vmatpush1.bf16.msra.mxu0 0
    %562 = vmatprep.subr.bf16.mxu0 0
    %563 = vmatpush1.bf16.msra.mxu0 0
    %564 = vmatprep.mubr.bf16.mxu0 0
    %565 = vmatmul.mubr.bf16.gmra.mrb[0].mxu0 %v460
    %v566 = vpop.f32.mrb[0].mxu0
    %v567 = vadd.f32 %v482, %v566
    %v568 = vpop.f32.mrb[0].mxu0
    %v569 = vpop.f32.mrb[0].mxu0
    %v570 = vadd.f32 %v482, %v569
    %v571 = vpop.f32.mrb[0].mxu0
    %572 = vdwg.mxu0
    %573 = vst [vmem:[#allocation14] sm:$0xff] %v567
    %574 = vst [vmem:[#allocation14 + $0x8] sm:$0xff] %v570
    // Predicated region
    $region58: #{fc_layer_forward.1} parent=1 // pred_check
      _
    $region59: #{fc_layer_forward.1} parent=1 // pred_check_branch
      %576 = sbr.rel (0) target = $region61
    $region60: #{fc_layer_forward.1} parent=1 // pred_region
      %s578 = ssub.s32 256, 256
      %579 = vsyncadd [#allocation4], %s578
      %s580 = sshll.u32 [#allocation14], 4
      %s581 = int_to_ptr.vmem [resolvable:$true] %s580
      %586 = dma.vmem_to_hbm [thread:$0]  %s581, 256, %s7, [#allocation4], 128, 128, 8
    $region61: #{fc_layer_forward.1} parent=1 // pred_fallthru
      _
    // Predicated region
    $region62: #{fc_layer_forward.1} parent=1 // pred_check
      _
    $region63: #{fc_layer_forward.1} parent=1 // pred_check_branch
      %588 = sbr.rel (0) target = $region65
    $region64: #{fc_layer_forward.1} parent=1 // pred_region
      %589 = dma.done [#allocation4], 256
    $region65: #{fc_layer_forward.1} parent=1 // pred_fallthru
      _
    %590 = vsyncpa [#allocation3], 1
    %591 = vsyncpa [#allocation6], 1
    %592 = vsyncpa [#allocation9], 1
    %593 = vsyncpa [#allocation12], 1
    %594 = vsyncpa [#allocation4], 1

// kernel: fc_layer_forward.1
$region0: #{fc_layer_forward.1}
  #allocation0 [shape = 'u32[]', space=smem, size = 0x4, offset = 0x4, fixed_abs, tag = 'smem constant byte address 0x4 - core index']
  #allocation1 [shape = 'u32[144,128]{1,0:T(1,128)}', space=vmem, size = 0x12000, scoped, tag = 'internal scratch']
  %s0 = inlined_call_operand.hbm [shape: bf16[16,128], index: 0, kind: input, shape index: {}]
  %s1 = inlined_call_operand.hbm [shape: bf16[128,256], index: 1, kind: input, shape index: {}]
  %s2 = inlined_call_operand.hbm [shape: f32[1,256], index: 2, kind: input, shape index: {}]
  %s3 = inlined_call_operand.hbm [shape: bf16[256,128], index: 3, kind: input, shape index: {}]
  %s4 = inlined_call_operand.hbm [shape: f32[1,128], index: 4, kind: input, shape index: {}]
  %s5 = inlined_call_operand.hbm [shape: bf16[128,128], index: 5, kind: input, shape index: {}]
  %s6 = inlined_call_operand.hbm [shape: f32[1,128], index: 6, kind: input, shape index: {}]
  %s7 = inlined_call_operand.hbm [shape: f32[16,128], index: 7, kind: output, shape index: {}]
  %s8 = sld [smem:[#allocation0]]
  $region66: #{fc_layer_forward.1} parent=0
    _
  %s10 = ssub.s32 1, %s8
  %s11 = scalar_select 0, %s10, %s8
  $region1: #{fc_layer_forward.1} parent=0
    #allocation2 [shape = 'u8[4096]{0}', space=vmem, size = 0x1000, scoped, tag = 'input window, operand 0, single buffered']
    #allocation3 [shape = 's32[1]{0}', space=sflag, size = 0x4, scoped, tag = 'scoped memory for fc_layer_forward.1']
    #allocation4 [shape = 's32[1]{0}', space=sflag, size = 0x4, scoped, tag = 'scoped memory for fc_layer_forward.1']
    #allocation5 [shape = 'u8[65536]{0}', space=vmem, size = 0x10000, scoped, tag = 'input window, operand 1, single buffered']
    #allocation6 [shape = 's32[1]{0}', space=sflag, size = 0x4, scoped, tag = 'scoped memory for fc_layer_forward.1']
    #allocation7 [shape = 'u8[1024]{0}', space=vmem, size = 0x400, scoped, tag = 'input window, operand 2, single buffered']
    #allocation8 [shape = 'u8[65536]{0}', space=vmem, size = 0x10000, scoped, tag = 'input window, operand 3, single buffered']
    #allocation9 [shape = 's32[1]{0}', space=sflag, size = 0x4, scoped, tag = 'scoped memory for fc_layer_forward.1']
    #allocation10 [shape = 'u8[512]{0}', space=vmem, size = 0x400, scoped, tag = 'input window, operand 4, single buffered']
    #allocation11 [shape = 'u8[32768]{0}', space=vmem, size = 0x8000, scoped, tag = 'input window, operand 5, single buffered']
    #allocation12 [shape = 's32[1]{0}', space=sflag, size = 0x4, scoped, tag = 'scoped memory for fc_layer_forward.1']
    #allocation13 [shape = 'u8[512]{0}', space=vmem, size = 0x400, scoped, tag = 'input window, operand 6, single buffered']
    #allocation14 [shape = 'u8[8192]{0}', space=vmem, size = 0x2000, scoped, tag = 'output window, operand 0, single buffered']
    %12 = vsyncpa [#allocation3], 0
    %13 = vsyncpa [#allocation6], 0
    %14 = vsyncpa [#allocation9], 0
    %15 = vsyncpa [#allocation12], 0
    %16 = vsyncpa [#allocation4], 0
    // Predicated region
    $region2: #{fc_layer_forward.1} parent=1 // pred_check
      _
    $region3: #{fc_layer_forward.1} parent=1 // pred_check_branch
      %18 = sbr.rel (0) target = $region5
    $region4: #{fc_layer_forward.1} parent=1 // pred_region
      %s20 = ssub.s32 128, 128
      %21 = vsyncadd [#allocation3], %s20
      %s22 = sshll.u32 [#allocation2], 4
      %s23 = int_to_ptr.vmem [resolvable:$true] %s22
      %28 = dma.hbm_to_vmem [thread:$0]  %s0, 128, %s23, [#allocation3], 64, 64, 4
    $region5: #{fc_layer_forward.1} parent=1 // pred_fallthru
      _
    // Predicated region
    $region6: #{fc_layer_forward.1} parent=1 // pred_check
      _
    $region7: #{fc_layer_forward.1} parent=1 // pred_check_branch
      %30 = sbr.rel (0) target = $region9
    $region8: #{fc_layer_forward.1} parent=1 // pred_region
      %s32 = ssub.s32 2048, 2048
      %33 = vsyncadd [#allocation6], %s32
      %s34 = sshll.u32 [#allocation5], 4
      %s35 = int_to_ptr.vmem [resolvable:$true] %s34
      %40 = dma.hbm_to_vmem [thread:$0]  %s1, 2048, %s35, [#allocation6], 128, 128, 8
    $region9: #{fc_layer_forward.1} parent=1 // pred_fallthru
      _
    // Predicated region
    $region10: #{fc_layer_forward.1} parent=1 // pred_check
      _
    $region11: #{fc_layer_forward.1} parent=1 // pred_check_branch
      %42 = sbr.rel (0) target = $region13
    $region12: #{fc_layer_forward.1} parent=1 // pred_region
      %s44 = ssub.s32 32, 32
      %45 = vsyncadd [#allocation6], %s44
      %s47 = sshll.u32 [#allocation7], 4
      %s48 = int_to_ptr.vmem [resolvable:$true] %s47
      %50 = dma.hbm_to_vmem [thread:$0]  %s2, 32, %s48, [#allocation6]
    $region13: #{fc_layer_forward.1} parent=1 // pred_fallthru
      _
    // Predicated region
    $region14: #{fc_layer_forward.1} parent=1 // pred_check
      _
    $region15: #{fc_layer_forward.1} parent=1 // pred_check_branch
      %52 = sbr.rel (0) target = $region17
    $region16: #{fc_layer_forward.1} parent=1 // pred_region
      %s54 = ssub.s32 2048, 2048
      %55 = vsyncadd [#allocation9], %s54
      %s56 = sshll.u32 [#allocation8], 4
      %s57 = int_to_ptr.vmem [resolvable:$true] %s56
      %62 = dma.hbm_to_vmem [thread:$0]  %s3, 2048, %s57, [#allocation9], 64, 64, 4
    $region17: #{fc_layer_forward.1} parent=1 // pred_fallthru
      _
    // Predicated region
    $region18: #{fc_layer_forward.1} parent=1 // pred_check
      _
    $region19: #{fc_layer_forward.1} parent=1 // pred_check_branch
      %64 = sbr.rel (0) target = $region21
    $region20: #{fc_layer_forward.1} parent=1 // pred_region
      %s66 = ssub.s32 16, 16
      %67 = vsyncadd [#allocation9], %s66
      %s69 = sshll.u32 [#allocation10], 4
      %s70 = int_to_ptr.vmem [resolvable:$true] %s69
      %72 = dma.hbm_to_vmem [thread:$0]  %s4, 16, %s70, [#allocation9]
    $region21: #{fc_layer_forward.1} parent=1 // pred_fallthru
      _
    // Predicated region
    $region22: #{fc_layer_forward.1} parent=1 // pred_check
      _
    $region23: #{fc_layer_forward.1} parent=1 // pred_check_branch
      %74 = sbr.rel (0) target = $region25
    $region24: #{fc_layer_forward.1} parent=1 // pred_region
      %s76 = ssub.s32 1024, 1024
      %77 = vsyncadd [#allocation12], %s76
      %s78 = sshll.u32 [#allocation11], 4
      %s79 = int_to_ptr.vmem [resolvable:$true] %s78
      %84 = dma.hbm_to_vmem [thread:$0]  %s5, 1024, %s79, [#allocation12], 64, 64, 4
    $region25: #{fc_layer_forward.1} parent=1 // pred_fallthru
      _
    // Predicated region
    $region26: #{fc_layer_forward.1} parent=1 // pred_check
      _
    $region27: #{fc_layer_forward.1} parent=1 // pred_check_branch
      %86 = sbr.rel (0) target = $region29
    $region28: #{fc_layer_forward.1} parent=1 // pred_region
      %s88 = ssub.s32 16, 16
      %89 = vsyncadd [#allocation12], %s88
      %s91 = sshll.u32 [#allocation13], 4
      %s92 = int_to_ptr.vmem [resolvable:$true] %s91
      %94 = dma.hbm_to_vmem [thread:$0]  %s6, 16, %s92, [#allocation12]
    $region29: #{fc_layer_forward.1} parent=1 // pred_fallthru
      _
    // Predicated region
    $region30: #{fc_layer_forward.1} parent=1 // pred_check
      _
    $region31: #{fc_layer_forward.1} parent=1 // pred_check_branch
      %96 = sbr.rel (0) target = $region33
    $region32: #{fc_layer_forward.1} parent=1 // pred_region
      %97 = dma.done [#allocation3], 128
    $region33: #{fc_layer_forward.1} parent=1 // pred_fallthru
      _
    // Predicated region
    $region34: #{fc_layer_forward.1} parent=1 // pred_check
      _
    $region35: #{fc_layer_forward.1} parent=1 // pred_check_branch
      %99 = sbr.rel (0) target = $region37
    $region36: #{fc_layer_forward.1} parent=1 // pred_region
      %100 = dma.done [#allocation6], 2048
    $region37: #{fc_layer_forward.1} parent=1 // pred_fallthru
      _
    // Predicated region
    $region38: #{fc_layer_forward.1} parent=1 // pred_check
      _
    $region39: #{fc_layer_forward.1} parent=1 // pred_check_branch
      %102 = sbr.rel (0) target = $region41
    $region40: #{fc_layer_forward.1} parent=1 // pred_region
      %103 = dma.done [#allocation6], 32
    $region41: #{fc_layer_forward.1} parent=1 // pred_fallthru
      _
    // Predicated region
    $region42: #{fc_layer_forward.1} parent=1 // pred_check
      _
    $region43: #{fc_layer_forward.1} parent=1 // pred_check_branch
      %105 = sbr.rel (0) target = $region45
    $region44: #{fc_layer_forward.1} parent=1 // pred_region
      %106 = dma.done [#allocation9], 2048
    $region45: #{fc_layer_forward.1} parent=1 // pred_fallthru
      _
    // Predicated region
    $region46: #{fc_layer_forward.1} parent=1 // pred_check
      _
    $region47: #{fc_layer_forward.1} parent=1 // pred_check_branch
      %108 = sbr.rel (0) target = $region49
    $region48: #{fc_layer_forward.1} parent=1 // pred_region
      %109 = dma.done [#allocation9], 16
    $region49: #{fc_layer_forward.1} parent=1 // pred_fallthru
      _
    // Predicated region
    $region50: #{fc_layer_forward.1} parent=1 // pred_check
      _
    $region51: #{fc_layer_forward.1} parent=1 // pred_check_branch
      %111 = sbr.rel (0) target = $region53
    $region52: #{fc_layer_forward.1} parent=1 // pred_region
      %112 = dma.done [#allocation12], 1024
    $region53: #{fc_layer_forward.1} parent=1 // pred_fallthru
      _
    // Predicated region
    $region54: #{fc_layer_forward.1} parent=1 // pred_check
      _
    $region55: #{fc_layer_forward.1} parent=1 // pred_check_branch
      %114 = sbr.rel (0) target = $region57
    $region56: #{fc_layer_forward.1} parent=1 // pred_region
      %115 = dma.done [#allocation12], 16
    $region57: #{fc_layer_forward.1} parent=1 // pred_fallthru
      _
    %v117 = vld [vmem:[#allocation2] sm:$0xf]
    %v118 = vld [vmem:[#allocation2 + $0x4] sm:$0xf]
    %v119 = vld [vmem:[#allocation5] sm:$0xff]
    %v120 = vld [vmem:[#allocation5 + $0x8] sm:$0xff]
    %v121 = vld [vmem:[#allocation5 + $0x10] sm:$0xff]
    %v122 = vld [vmem:[#allocation5 + $0x18] sm:$0xff]
    %v123 = vld [vmem:[#allocation5 + $0x20] sm:$0xff]
    %v124 = vld [vmem:[#allocation5 + $0x28] sm:$0xff]
    %v125 = vld [vmem:[#allocation5 + $0x30] sm:$0xff]
    %v126 = vld [vmem:[#allocation5 + $0x38] sm:$0xff]
    %v127 = vld [vmem:[#allocation5 + $0x40] sm:$0xff]
    %v128 = vld [vmem:[#allocation5 + $0x48] sm:$0xff]
    %v129 = vld [vmem:[#allocation5 + $0x50] sm:$0xff]
    %v130 = vld [vmem:[#allocation5 + $0x58] sm:$0xff]
    %v131 = vld [vmem:[#allocation5 + $0x60] sm:$0xff]
    %v132 = vld [vmem:[#allocation5 + $0x68] sm:$0xff]
    %v133 = vld [vmem:[#allocation5 + $0x70] sm:$0xff]
    %v134 = vld [vmem:[#allocation5 + $0x78] sm:$0xff]
    %v135 = vld [vmem:[#allocation7] sm:$0x3]
    %v137 = vlaneseq
    %v138 = vshrl.u32 %v137, 7
    %v139 = vsub.s32 0, %v138
    %v140 = vrot.slane %v135, %v139
    %v141 = vlaneseq
    %v142 = vshrl.u32 %v141, 7
    %v143 = vsub.s32 1, %v142
    %v144 = vrot.slane %v135, %v143
    %v149 = vunpack.c.l.b16 %v117
    %v150 = vunpack.c.l.b16 %v118
    %v151 = vpack.c.b16 %v150, %v149
    %v169 = vunpack.c.l.b16 %v119
    %v170 = vunpack.c.h.b16 %v119
    %v171 = vunpack.c.l.b16 %v120
    %v172 = vunpack.c.h.b16 %v120
    %v173 = vunpack.c.l.b16 %v121
    %v174 = vunpack.c.h.b16 %v121
    %v175 = vunpack.c.l.b16 %v122
    %v176 = vunpack.c.h.b16 %v122
    %v177 = vunpack.c.l.b16 %v123
    %v178 = vunpack.c.h.b16 %v123
    %v179 = vunpack.c.l.b16 %v124
    %v180 = vunpack.c.h.b16 %v124
    %v181 = vunpack.c.l.b16 %v125
    %v182 = vunpack.c.h.b16 %v125
    %v183 = vunpack.c.l.b16 %v126
    %v184 = vunpack.c.h.b16 %v126
    %v185 = vunpack.c.l.b16 %v127
    %v186 = vunpack.c.h.b16 %v127
    %v187 = vunpack.c.l.b16 %v128
    %v188 = vunpack.c.h.b16 %v128
    %v189 = vunpack.c.l.b16 %v129
    %v190 = vunpack.c.h.b16 %v129
    %v191 = vunpack.c.l.b16 %v130
    %v192 = vunpack.c.h.b16 %v130
    %v193 = vunpack.c.l.b16 %v131
    %v194 = vunpack.c.h.b16 %v131
    %v195 = vunpack.c.l.b16 %v132
    %v196 = vunpack.c.h.b16 %v132
    %v197 = vunpack.c.l.b16 %v133
    %v198 = vunpack.c.h.b16 %v133
    %v199 = vunpack.c.l.b16 %v134
    %v200 = vunpack.c.h.b16 %v134
    %v201 = vpack.c.b16 %v171, %v169
    %v202 = vpack.c.b16 %v172, %v170
    %v203 = vpack.c.b16 %v175, %v173
    %v204 = vpack.c.b16 %v176, %v174
    %v205 = vpack.c.b16 %v179, %v177
    %v206 = vpack.c.b16 %v180, %v178
    %v207 = vpack.c.b16 %v183, %v181
    %v208 = vpack.c.b16 %v184, %v182
    %v209 = vpack.c.b16 %v187, %v185
    %v210 = vpack.c.b16 %v188, %v186
    %v211 = vpack.c.b16 %v191, %v189
    %v212 = vpack.c.b16 %v192, %v190
    %v213 = vpack.c.b16 %v195, %v193
    %v214 = vpack.c.b16 %v196, %v194
    %v215 = vpack.c.b16 %v199, %v197
    %v216 = vpack.c.b16 %v200, %v198
    %233 = vmatprep.subr.bf16.mxu0 %v202
    %234 = vmatpush1.bf16.msra.mxu0 %v201
    %235 = vmatprep.subr.bf16.mxu0 %v204
    %236 = vmatpush1.bf16.msra.mxu0 %v203
    %237 = vmatprep.subr.bf16.mxu0 %v206
    %238 = vmatpush1.bf16.msra.mxu0 %v205
    %239 = vmatprep.subr.bf16.mxu0 %v208
    %240 = vmatpush1.bf16.msra.mxu0 %v207
    %241 = vmatprep.subr.bf16.mxu0 %v210
    %242 = vmatpush1.bf16.msra.mxu0 %v209
    %243 = vmatprep.subr.bf16.mxu0 %v212
    %244 = vmatpush1.bf16.msra.mxu0 %v211
    %245 = vmatprep.subr.bf16.mxu0 %v214
    %246 = vmatpush1.bf16.msra.mxu0 %v213
    %247 = vmatprep.subr.bf16.mxu0 %v216
    %248 = vmatpush1.bf16.msra.mxu0 %v215
    %249 = vmatprep.subr.bf16.mxu0 0
    %250 = vmatpush1.bf16.msra.mxu0 0
    %251 = vmatprep.subr.bf16.mxu0 0
    %252 = vmatpush1.bf16.msra.mxu0 0
    %253 = vmatprep.subr.bf16.mxu0 0
    %254 = vmatpush1.bf16.msra.mxu0 0
    %255 = vmatprep.subr.bf16.mxu0 0
    %256 = vmatpush1.bf16.msra.mxu0 0
    %257 = vmatprep.subr.bf16.mxu0 0
    %258 = vmatpush1.bf16.msra.mxu0 0
    %259 = vmatprep.subr.bf16.mxu0 0
    %260 = vmatpush1.bf16.msra.mxu0 0
    %261 = vmatprep.subr.bf16.mxu0 0
    %262 = vmatpush1.bf16.msra.mxu0 0
    %263 = vmatprep.subr.bf16.mxu0 0
    %264 = vmatpush1.bf16.msra.mxu0 0
    %265 = vmatprep.mubr.bf16.mxu0 0
    %266 = vmatmul.mubr.bf16.gmra.mrb[0].mxu0 %v151
    %v267 = vpop.f32.mrb[0].mxu0
    %v268 = vadd.f32 %v140, %v267
    %v269 = vpop.f32.mrb[0].mxu0
    %v270 = vadd.f32 %v144, %v269
    %v271 = vpop.f32.mrb[0].mxu0
    %v272 = vadd.f32 %v140, %v271
    %v273 = vpop.f32.mrb[0].mxu0
    %v274 = vadd.f32 %v144, %v273
    %275 = vdwg.mxu0
    %v276 = vmax.f32 %v268, 0.0
    %v277 = vmax.f32 %v270, 0.0
    %v278 = vmax.f32 %v272, 0.0
    %v279 = vmax.f32 %v274, 0.0
    %v280 = vpack.c.bf16 %v278, %v276
    %v281 = vpack.c.bf16 %v279, %v277
    %v282 = vld [vmem:[#allocation8] sm:$0xf]
    %v283 = vld [vmem:[#allocation8 + $0x4] sm:$0xf]
    %v284 = vld [vmem:[#allocation8 + $0x8] sm:$0xf]
    %v285 = vld [vmem:[#allocation8 + $0xc] sm:$0xf]
    %v286 = vld [vmem:[#allocation8 + $0x10] sm:$0xf]
    %v287 = vld [vmem:[#allocation8 + $0x14] sm:$0xf]
    %v288 = vld [vmem:[#allocation8 + $0x18] sm:$0xf]
    %v289 = vld [vmem:[#allocation8 + $0x1c] sm:$0xf]
    %v290 = vld [vmem:[#allocation8 + $0x20] sm:$0xf]
    %v291 = vld [vmem:[#allocation8 + $0x24] sm:$0xf]
    %v292 = vld [vmem:[#allocation8 + $0x28] sm:$0xf]
    %v293 = vld [vmem:[#allocation8 + $0x2c] sm:$0xf]
    %v294 = vld [vmem:[#allocation8 + $0x30] sm:$0xf]
    %v295 = vld [vmem:[#allocation8 + $0x34] sm:$0xf]
    %v296 = vld [vmem:[#allocation8 + $0x38] sm:$0xf]
    %v297 = vld [vmem:[#allocation8 + $0x3c] sm:$0xf]
    %v298 = vld [vmem:[#allocation8 + $0x40] sm:$0xf]
    %v299 = vld [vmem:[#allocation8 + $0x44] sm:$0xf]
    %v300 = vld [vmem:[#allocation8 + $0x48] sm:$0xf]
    %v301 = vld [vmem:[#allocation8 + $0x4c] sm:$0xf]
    %v302 = vld [vmem:[#allocation8 + $0x50] sm:$0xf]
    %v303 = vld [vmem:[#allocation8 + $0x54] sm:$0xf]
    %v304 = vld [vmem:[#allocation8 + $0x58] sm:$0xf]
    %v305 = vld [vmem:[#allocation8 + $0x5c] sm:$0xf]
    %v306 = vld [vmem:[#allocation8 + $0x60] sm:$0xf]
    %v307 = vld [vmem:[#allocation8 + $0x64] sm:$0xf]
    %v308 = vld [vmem:[#allocation8 + $0x68] sm:$0xf]
    %v309 = vld [vmem:[#allocation8 + $0x6c] sm:$0xf]
    %v310 = vld [vmem:[#allocation8 + $0x70] sm:$0xf]
    %v311 = vld [vmem:[#allocation8 + $0x74] sm:$0xf]
    %v312 = vld [vmem:[#allocation8 + $0x78] sm:$0xf]
    %v313 = vld [vmem:[#allocation8 + $0x7c] sm:$0xf]
    %v314 = vld [vmem:[#allocation10] sm:$0x1]
    %v316 = vlaneseq
    %v317 = vshrl.u32 %v316, 7
    %v318 = vsub.s32 0, %v317
    %v319 = vrot.slane %v314, %v318
    %v353 = vunpack.c.l.b16 %v282
    %v354 = vunpack.c.l.b16 %v283
    %v355 = vunpack.c.l.b16 %v284
    %v356 = vunpack.c.l.b16 %v285
    %v357 = vunpack.c.l.b16 %v286
    %v358 = vunpack.c.l.b16 %v287
    %v359 = vunpack.c.l.b16 %v288
    %v360 = vunpack.c.l.b16 %v289
    %v361 = vunpack.c.l.b16 %v290
    %v362 = vunpack.c.l.b16 %v291
    %v363 = vunpack.c.l.b16 %v292
    %v364 = vunpack.c.l.b16 %v293
    %v365 = vunpack.c.l.b16 %v294
    %v366 = vunpack.c.l.b16 %v295
    %v367 = vunpack.c.l.b16 %v296
    %v368 = vunpack.c.l.b16 %v297
    %v369 = vunpack.c.l.b16 %v298
    %v370 = vunpack.c.l.b16 %v299
    %v371 = vunpack.c.l.b16 %v300
    %v372 = vunpack.c.l.b16 %v301
    %v373 = vunpack.c.l.b16 %v302
    %v374 = vunpack.c.l.b16 %v303
    %v375 = vunpack.c.l.b16 %v304
    %v376 = vunpack.c.l.b16 %v305
    %v377 = vunpack.c.l.b16 %v306
    %v378 = vunpack.c.l.b16 %v307
    %v379 = vunpack.c.l.b16 %v308
    %v380 = vunpack.c.l.b16 %v309
    %v381 = vunpack.c.l.b16 %v310
    %v382 = vunpack.c.l.b16 %v311
    %v383 = vunpack.c.l.b16 %v312
    %v384 = vunpack.c.l.b16 %v313
    %v385 = vpack.c.b16 %v354, %v353
    %v386 = vpack.c.b16 %v356, %v355
    %v387 = vpack.c.b16 %v358, %v357
    %v388 = vpack.c.b16 %v360, %v359
    %v389 = vpack.c.b16 %v362, %v361
    %v390 = vpack.c.b16 %v364, %v363
    %v391 = vpack.c.b16 %v366, %v365
    %v392 = vpack.c.b16 %v368, %v367
    %v393 = vpack.c.b16 %v370, %v369
    %v394 = vpack.c.b16 %v372, %v371
    %v395 = vpack.c.b16 %v374, %v373
    %v396 = vpack.c.b16 %v376, %v375
    %v397 = vpack.c.b16 %v378, %v377
    %v398 = vpack.c.b16 %v380, %v379
    %v399 = vpack.c.b16 %v382, %v381
    %v400 = vpack.c.b16 %v384, %v383
    %417 = vmatprep.subr.bf16.mxu0 0
    %418 = vmatpush1.bf16.msra.mxu0 %v385
    %419 = vmatprep.subr.bf16.mxu0 0
    %420 = vmatpush1.bf16.msra.mxu0 %v386
    %421 = vmatprep.subr.bf16.mxu0 0
    %422 = vmatpush1.bf16.msra.mxu0 %v387
    %423 = vmatprep.subr.bf16.mxu0 0
    %424 = vmatpush1.bf16.msra.mxu0 %v388
    %425 = vmatprep.subr.bf16.mxu0 0
    %426 = vmatpush1.bf16.msra.mxu0 %v389
    %427 = vmatprep.subr.bf16.mxu0 0
    %428 = vmatpush1.bf16.msra.mxu0 %v390
    %429 = vmatprep.subr.bf16.mxu0 0
    %430 = vmatpush1.bf16.msra.mxu0 %v391
    %431 = vmatprep.subr.bf16.mxu0 0
    %432 = vmatpush1.bf16.msra.mxu0 %v392
    %433 = vmatprep.subr.bf16.mxu0 0
    %434 = vmatpush1.bf16.msra.mxu0 %v393
    %435 = vmatprep.subr.bf16.mxu0 0
    %436 = vmatpush1.bf16.msra.mxu0 %v394
    %437 = vmatprep.subr.bf16.mxu0 0
    %438 = vmatpush1.bf16.msra.mxu0 %v395
    %439 = vmatprep.subr.bf16.mxu0 0
    %440 = vmatpush1.bf16.msra.mxu0 %v396
    %441 = vmatprep.subr.bf16.mxu0 0
    %442 = vmatpush1.bf16.msra.mxu0 %v397
    %443 = vmatprep.subr.bf16.mxu0 0
    %444 = vmatpush1.bf16.msra.mxu0 %v398
    %445 = vmatprep.subr.bf16.mxu0 0
    %446 = vmatpush1.bf16.msra.mxu0 %v399
    %447 = vmatprep.subr.bf16.mxu0 0
    %448 = vmatpush1.bf16.msra.mxu0 %v400
    %449 = vmatprep.mubr.bf16.mxu0 %v281
    %450 = vmatmul.mubr.bf16.gmra.mrb[0].mxu0 %v280
    %v451 = vpop.f32.mrb[0].mxu0
    %v452 = vadd.f32 %v319, %v451
    %v453 = vpop.f32.mrb[0].mxu0
    %v454 = vpop.f32.mrb[0].mxu0
    %v455 = vadd.f32 %v319, %v454
    %v456 = vpop.f32.mrb[0].mxu0
    %457 = vdwg.mxu0
    %v458 = vmax.f32 %v452, 0.0
    %v459 = vmax.f32 %v455, 0.0
    %v460 = vpack.c.bf16 %v459, %v458
    %v461 = vld [vmem:[#allocation11] sm:$0xf]
    %v462 = vld [vmem:[#allocation11 + $0x4] sm:$0xf]
    %v463 = vld [vmem:[#allocation11 + $0x8] sm:$0xf]
    %v464 = vld [vmem:[#allocation11 + $0xc] sm:$0xf]
    %v465 = vld [vmem:[#allocation11 + $0x10] sm:$0xf]
    %v466 = vld [vmem:[#allocation11 + $0x14] sm:$0xf]
    %v467 = vld [vmem:[#allocation11 + $0x18] sm:$0xf]
    %v468 = vld [vmem:[#allocation11 + $0x1c] sm:$0xf]
    %v469 = vld [vmem:[#allocation11 + $0x20] sm:$0xf]
    %v470 = vld [vmem:[#allocation11 + $0x24] sm:$0xf]
    %v471 = vld [vmem:[#allocation11 + $0x28] sm:$0xf]
    %v472 = vld [vmem:[#allocation11 + $0x2c] sm:$0xf]
    %v473 = vld [vmem:[#allocation11 + $0x30] sm:$0xf]
    %v474 = vld [vmem:[#allocation11 + $0x34] sm:$0xf]
    %v475 = vld [vmem:[#allocation11 + $0x38] sm:$0xf]
    %v476 = vld [vmem:[#allocation11 + $0x3c] sm:$0xf]
    %v477 = vld [vmem:[#allocation13] sm:$0x1]
    %v479 = vlaneseq
    %v480 = vshrl.u32 %v479, 7
    %v481 = vsub.s32 0, %v480
    %v482 = vrot.slane %v477, %v481
    %v500 = vunpack.c.l.b16 %v461
    %v501 = vunpack.c.l.b16 %v462
    %v502 = vunpack.c.l.b16 %v463
    %v503 = vunpack.c.l.b16 %v464
    %v504 = vunpack.c.l.b16 %v465
    %v505 = vunpack.c.l.b16 %v466
    %v506 = vunpack.c.l.b16 %v467
    %v507 = vunpack.c.l.b16 %v468
    %v508 = vunpack.c.l.b16 %v469
    %v509 = vunpack.c.l.b16 %v470
    %v510 = vunpack.c.l.b16 %v471
    %v511 = vunpack.c.l.b16 %v472
    %v512 = vunpack.c.l.b16 %v473
    %v513 = vunpack.c.l.b16 %v474
    %v514 = vunpack.c.l.b16 %v475
    %v515 = vunpack.c.l.b16 %v476
    %v516 = vpack.c.b16 %v501, %v500
    %v517 = vpack.c.b16 %v503, %v502
    %v518 = vpack.c.b16 %v505, %v504
    %v519 = vpack.c.b16 %v507, %v506
    %v520 = vpack.c.b16 %v509, %v508
    %v521 = vpack.c.b16 %v511, %v510
    %v522 = vpack.c.b16 %v513, %v512
    %v523 = vpack.c.b16 %v515, %v514
    %532 = vmatprep.subr.bf16.mxu0 0
    %533 = vmatpush1.bf16.msra.mxu0 %v516
    %534 = vmatprep.subr.bf16.mxu0 0
    %535 = vmatpush1.bf16.msra.mxu0 %v517
    %536 = vmatprep.subr.bf16.mxu0 0
    %537 = vmatpush1.bf16.msra.mxu0 %v518
    %538 = vmatprep.subr.bf16.mxu0 0
    %539 = vmatpush1.bf16.msra.mxu0 %v519
    %540 = vmatprep.subr.bf16.mxu0 0
    %541 = vmatpush1.bf16.msra.mxu0 %v520
    %542 = vmatprep.subr.bf16.mxu0 0
    %543 = vmatpush1.bf16.msra.mxu0 %v521
    %544 = vmatprep.subr.bf16.mxu0 0
    %545 = vmatpush1.bf16.msra.mxu0 %v522
    %546 = vmatprep.subr.bf16.mxu0 0
    %547 = vmatpush1.bf16.msra.mxu0 %v523
    %548 = vmatprep.subr.bf16.mxu0 0
    %549 = vmatpush1.bf16.msra.mxu0 0
    %550 = vmatprep.subr.bf16.mxu0 0
    %551 = vmatpush1.bf16.msra.mxu0 0
    %552 = vmatprep.subr.bf16.mxu0 0
    %553 = vmatpush1.bf16.msra.mxu0 0
    %554 = vmatprep.subr.bf16.mxu0 0
    %555 = vmatpush1.bf16.msra.mxu0 0
    %556 = vmatprep.subr.bf16.mxu0 0
    %557 = vmatpush1.bf16.msra.mxu0 0
    %558 = vmatprep.subr.bf16.mxu0 0
    %559 = vmatpush1.bf16.msra.mxu0 0
    %560 = vmatprep.subr.bf16.mxu0 0
    %561 = vmatpush1.bf16.msra.mxu0 0
    %562 = vmatprep.subr.bf16.mxu0 0
    %563 = vmatpush1.bf16.msra.mxu0 0
    %564 = vmatprep.mubr.bf16.mxu0 0
    %565 = vmatmul.mubr.bf16.gmra.mrb[0].mxu0 %v460
    %v566 = vpop.f32.mrb[0].mxu0
    %v567 = vadd.f32 %v482, %v566
    %v568 = vpop.f32.mrb[0].mxu0
    %v569 = vpop.f32.mrb[0].mxu0
    %v570 = vadd.f32 %v482, %v569
    %v571 = vpop.f32.mrb[0].mxu0
    %572 = vdwg.mxu0
    %573 = vst [vmem:[#allocation14] sm:$0xff] %v567
    %574 = vst [vmem:[#allocation14 + $0x8] sm:$0xff] %v570
    // Predicated region
    $region58: #{fc_layer_forward.1} parent=1 // pred_check
      _
    $region59: #{fc_layer_forward.1} parent=1 // pred_check_branch
      %576 = sbr.rel (0) target = $region61
    $region60: #{fc_layer_forward.1} parent=1 // pred_region
      %s578 = ssub.s32 256, 256
      %579 = vsyncadd [#allocation4], %s578
      %s580 = sshll.u32 [#allocation14], 4
      %s581 = int_to_ptr.vmem [resolvable:$true] %s580
      %586 = dma.vmem_to_hbm [thread:$0]  %s581, 256, %s7, [#allocation4], 128, 128, 8
    $region61: #{fc_layer_forward.1} parent=1 // pred_fallthru
      _
    // Predicated region
    $region62: #{fc_layer_forward.1} parent=1 // pred_check
      _
    $region63: #{fc_layer_forward.1} parent=1 // pred_check_branch
      %588 = sbr.rel (0) target = $region65
    $region64: #{fc_layer_forward.1} parent=1 // pred_region
      %589 = dma.done [#allocation4], 256
    $region65: #{fc_layer_forward.1} parent=1 // pred_fallthru
      _
    %590 = vsyncpa [#allocation3], 1
    %591 = vsyncpa [#allocation6], 1
    %592 = vsyncpa [#allocation9], 1
    %593 = vsyncpa [#allocation12], 1
    %594 = vsyncpa [#allocation4], 1

</llo_original>
